<compile_context>
chip_gen: v7x
topology: tpu7x:2x2x1
jax: 0.10.0
libtpu: 0.0.40
codegen_flags: <defaults>
</compile_context>

<pallas_src>
import functools

import jax
import jax.numpy as jnp
from jax.experimental import pallas as pl
from jax.experimental.pallas import tpu as pltpu

EPS = 1e-5
NEG_SLOPE = 0.2


def _gn_scale_bias(t, gamma, beta, count):
    """GroupNorm(num_groups=1) folded into per-channel (scale, bias).

    Single-pass statistics over the whole (C, H*W) tile; gamma/beta have shape
    (C, 1) and broadcast over the lane (H*W) axis. The caller applies the
    normalization as one fused `t * scale + bias` pass.
    """
    s = jnp.sum(t)
    ss = jnp.sum(t * t)
    inv_n = 1.0 / count
    mean = s * inv_n
    var = ss * inv_n - mean * mean
    inv = jax.lax.rsqrt(jnp.maximum(var, 0.0) + EPS)
    scale = gamma * inv                     # (C, 1)
    bias = beta - mean * scale              # (C, 1)
    return scale, bias


def _leaky_relu(t):
    return jnp.where(t >= 0, t, NEG_SLOPE * t)


def _inverted_res_block_kernel(x_ref,
                               w1_ref, g1_ref, b1_ref,
                               wdw_ref, bdw_ref, g2_ref, b2_ref,
                               w3_ref, g3_ref, b3_ref,
                               o_ref, *, W):
    # Layout: (C, H*W) per sample — channels on sublanes, H*W on lanes.
    _, C_in, HW = x_ref.shape
    B = w1_ref.shape[0]
    C_out = w3_ref.shape[0]

    x = x_ref[0].astype(jnp.float32)                        # (C_in, HW)

    # Border masks for reflection padding (computed once, shape (1, HW)).
    flat = jax.lax.broadcasted_iota(jnp.int32, (1, HW), 1)
    wpos = flat % W
    is_w0 = wpos == 0                 # w == 0
    is_wl = wpos == (W - 1)           # w == W-1
    is_h0 = flat < W                  # h == 0
    is_hl = flat >= (HW - W)          # h == H-1

    # ---- 1) expand 1x1 conv (bf16 MXU, f32 accum) + GroupNorm + LeakyReLU ----
    t = jnp.dot(w1_ref[...], x.astype(jnp.bfloat16),
                preferred_element_type=jnp.float32)          # (B, HW)
    sc, bi = _gn_scale_bias(t, g1_ref[...], b1_ref[...], float(B * HW))
    t = _leaky_relu(t * sc + bi)

    # ---- 2) depthwise 3x3 conv, reflect pad via roll + border fixup ----
    # pltpu.roll follows np.roll semantics: roll(x, k)[i] == x[(i - k) % N].
    # W-direction neighbor taps (reflect at w=0 / w=W-1).
    t_m1 = pltpu.roll(t, shift=1, axis=1)            # t[h, w-1] (wrapped)
    t_p1 = pltpu.roll(t, shift=HW - 1, axis=1)       # t[h, w+1] (wrapped)
    t_left = jnp.where(is_w0, t_p1, t_m1)            # t[h, reflect(w-1)]
    t_right = jnp.where(is_wl, t_m1, t_p1)           # t[h, reflect(w+1)]

    wdw = wdw_ref[...]                               # (B, 9), loaded once

    def wcol(k):
        return wdw[:, k:k + 1]                       # (B, 1) per-channel weight

    # Per-kernel-row combinations along W (cross-correlation, PyTorch order).
    g_top = wcol(0) * t_left + wcol(1) * t + wcol(2) * t_right   # ky = 0
    g_mid = wcol(3) * t_left + wcol(4) * t + wcol(5) * t_right   # ky = 1
    g_bot = wcol(6) * t_left + wcol(7) * t + wcol(8) * t_right   # ky = 2

    # H-direction shifts with reflection at h=0 / h=H-1 (rolls of +/- one row).
    def up(g):      # result[h] = g[reflect(h-1)]
        return jnp.where(is_h0,
                         pltpu.roll(g, shift=HW - W, axis=1),
                         pltpu.roll(g, shift=W, axis=1))

    def down(g):    # result[h] = g[reflect(h+1)]
        return jnp.where(is_hl,
                         pltpu.roll(g, shift=W, axis=1),
                         pltpu.roll(g, shift=HW - W, axis=1))

    acc = up(g_top) + g_mid + down(g_bot) + bdw_ref[...]
    sc, bi = _gn_scale_bias(acc, g2_ref[...], b2_ref[...], float(B * HW))
    acc = _leaky_relu(acc * sc + bi)

    # ---- 3) project 1x1 conv (bf16 MXU) + GroupNorm ----
    out = jnp.dot(w3_ref[...], acc.astype(jnp.bfloat16),
                  preferred_element_type=jnp.float32)        # (C_out, HW)
    sc, bi = _gn_scale_bias(out, g3_ref[...], b3_ref[...], float(C_out * HW))
    out = out * sc + bi

    # ---- 4) residual (static decision: in_ch == out_ch) ----
    if C_in == C_out:
        out = out + x

    o_ref[0] = out.astype(o_ref.dtype)


@jax.jit
def inverted_res_block(x_nchw, params):
    """x_nchw: (N, C_in, H, W) float32. Returns (N, C_out, H, W).

    No transposes: NCHW is reshaped (free, contiguous view) to (N, C, H*W) so
    the kernel sees a lane-dense spatial axis.
    """
    N, C_in, H, W = x_nchw.shape
    HW = H * W
    x = x_nchw.reshape(N, C_in, HW)
    B = params["w1"].shape[0]
    C_out = params["w3"].shape[0]

    kernel = functools.partial(_inverted_res_block_kernel, W=W)

    out = pl.pallas_call(
        kernel,
        out_shape=jax.ShapeDtypeStruct((N, C_out, HW), x_nchw.dtype),
        grid=(N,),
        in_specs=[
            pl.BlockSpec((1, C_in, HW), lambda n: (n, 0, 0)),   # x (per sample)
            pl.BlockSpec((B, C_in), lambda n: (0, 0)),          # w1 (expand 1x1, bf16)
            pl.BlockSpec((B, 1), lambda n: (0, 0)),             # gamma1
            pl.BlockSpec((B, 1), lambda n: (0, 0)),             # beta1
            pl.BlockSpec((B, 9), lambda n: (0, 0)),             # depthwise 3x3 weights
            pl.BlockSpec((B, 1), lambda n: (0, 0)),             # depthwise bias
            pl.BlockSpec((B, 1), lambda n: (0, 0)),             # gamma2
            pl.BlockSpec((B, 1), lambda n: (0, 0)),             # beta2
            pl.BlockSpec((C_out, B), lambda n: (0, 0)),         # w3 (project 1x1, bf16)
            pl.BlockSpec((C_out, 1), lambda n: (0, 0)),         # gamma3
            pl.BlockSpec((C_out, 1), lambda n: (0, 0)),         # beta3
        ],
        out_specs=pl.BlockSpec((1, C_out, HW), lambda n: (n, 0, 0)),
        compiler_params=pltpu.CompilerParams(dimension_semantics=("parallel",)),
    )(x, params["w1"], params["g1"], params["b1"],
      params["wdw"], params["bdw"], params["g2"], params["b2"],
      params["w3"], params["g3"], params["b3"])

    return out.reshape(N, C_out, H, W)


def make_params(key, in_ch, out_ch, expansion_ratio=2):
    # TODO(synk): expansion_ratio == 1 path (no expand conv) not implemented.
    assert expansion_ratio != 1
    bottleneck = int(round(in_ch * expansion_ratio))
    ks = jax.random.split(key, 10)
    f32 = jnp.float32
    return {
        # expand 1x1: PyTorch weight (B, C_in, 1, 1) -> (B, C_in); bf16 for MXU.
        "w1": (jax.random.normal(ks[0], (bottleneck, in_ch), f32) * 0.3
               ).astype(jnp.bfloat16),
        "g1": 1.0 + 0.1 * jax.random.normal(ks[1], (bottleneck, 1), f32),
        "b1": 0.1 * jax.random.normal(ks[2], (bottleneck, 1), f32),
        # depthwise 3x3: PyTorch weight (B, 1, 3, 3) -> (B, 9), row-major taps.
        "wdw": jax.random.normal(ks[3], (bottleneck, 9), f32) * 0.3,
        "bdw": 0.1 * jax.random.normal(ks[4], (bottleneck, 1), f32),
        "g2": 1.0 + 0.1 * jax.random.normal(ks[5], (bottleneck, 1), f32),
        "b2": 0.1 * jax.random.normal(ks[6], (bottleneck, 1), f32),
        # project 1x1: PyTorch weight (C_out, B, 1, 1) -> (C_out, B); bf16.
        "w3": (jax.random.normal(ks[7], (out_ch, bottleneck), f32) * 0.3
               ).astype(jnp.bfloat16),
        "g3": 1.0 + 0.1 * jax.random.normal(ks[8], (out_ch, 1), f32),
        "b3": 0.1 * jax.random.normal(ks[9], (out_ch, 1), f32),
    }


def ref_forward(x_nchw, params, matmul_dtype=jnp.float32):
    """Pure-JAX reference matching the PyTorch module (NCHW in/out).

    matmul_dtype=bf16 emulates the kernel's MXU operand casts (weights are
    stored bf16 either way); matmul_dtype=f32 is the full-precision reference.
    """
    x = x_nchw.astype(jnp.float32)
    N, C_in, H, W = x.shape

    def gn(t, g, b):
        mean = jnp.mean(t, axis=(1, 2, 3), keepdims=True)
        var = jnp.mean(jnp.square(t - mean), axis=(1, 2, 3), keepdims=True)
        gb = g.astype(jnp.float32).reshape(1, -1, 1, 1)
        bb = b.astype(jnp.float32).reshape(1, -1, 1, 1)
        return (t - mean) * jax.lax.rsqrt(var + EPS) * gb + bb

    lrelu = lambda t: jnp.where(t >= 0, t, NEG_SLOPE * t)

    # expand 1x1
    t = jnp.einsum("bc,nchw->nbhw",
                   params["w1"].astype(matmul_dtype), x.astype(matmul_dtype),
                   preferred_element_type=jnp.float32)
    t = lrelu(gn(t, params["g1"], params["b1"]))
    # depthwise 3x3, reflect pad
    tp = jnp.pad(t, ((0, 0), (0, 0), (1, 1), (1, 1)), mode="reflect")
    acc = jnp.zeros_like(t)
    wdw = params["wdw"]
    for ky in range(3):
        for kx in range(3):
            wtap = wdw[:, ky * 3 + kx].reshape(1, -1, 1, 1)
            acc = acc + tp[:, :, ky:ky + H, kx:kx + W] * wtap
    acc = acc + params["bdw"].reshape(1, -1, 1, 1)
    acc = lrelu(gn(acc, params["g2"], params["b2"]))
    # project 1x1
    out = jnp.einsum("ob,nbhw->nohw",
                     params["w3"].astype(matmul_dtype), acc.astype(matmul_dtype),
                     preferred_element_type=jnp.float32)
    out = gn(out, params["g3"], params["b3"])
    if C_in == out.shape[1]:
        out = out + x
    return out


if __name__ == "__main__":
    key = jax.random.PRNGKey(0)
    k_x, k_p = jax.random.split(key)

    N, C, H, W = 2, 4, 16, 16          # in_ch == out_ch == 4 -> residual path
    x = jax.random.normal(k_x, (N, C, H, W), jnp.float32)
    params = make_params(k_p, in_ch=C, out_ch=C, expansion_ratio=2)

    out = jax.block_until_ready(inverted_res_block(x, params))
    assert out.shape == (N, C, H, W), out.shape

    # Tight check against a reference emulating the kernel's bf16 matmul
    # operands; loose check against the full-f32 (PyTorch-semantics) reference.
    ref_bf16 = jax.block_until_ready(ref_forward(x, params, jnp.bfloat16))
    ref_f32 = jax.block_until_ready(ref_forward(x, params, jnp.float32))
    assert jnp.allclose(out, ref_bf16, rtol=3e-3, atol=3e-3), \
        float(jnp.max(jnp.abs(out - ref_bf16)))
    assert jnp.allclose(out, ref_f32, rtol=5e-2, atol=5e-2), \
        float(jnp.max(jnp.abs(out - ref_f32)))
    print("KERNEL_OK")
</pallas_src>

<mosaic_0001>
module attributes {stable_mosaic.version = 11 : i64} {
  func.func @_inverted_res_block_kernel(%arg0: i32, %arg1: memref<1x4x256xf32, #tpu.memory_space<vmem>>, %arg2: memref<8x4xbf16, #tpu.memory_space<vmem>>, %arg3: memref<8x1xf32, #tpu.memory_space<vmem>>, %arg4: memref<8x1xf32, #tpu.memory_space<vmem>>, %arg5: memref<8x9xf32, #tpu.memory_space<vmem>>, %arg6: memref<8x1xf32, #tpu.memory_space<vmem>>, %arg7: memref<8x1xf32, #tpu.memory_space<vmem>>, %arg8: memref<8x1xf32, #tpu.memory_space<vmem>>, %arg9: memref<4x8xbf16, #tpu.memory_space<vmem>>, %arg10: memref<4x1xf32, #tpu.memory_space<vmem>>, %arg11: memref<4x1xf32, #tpu.memory_space<vmem>>, %arg12: memref<1x4x256xf32, #tpu.memory_space<vmem>>) attributes {dimension_semantics = [#tpu.dimension_semantics<parallel>], iteration_bounds = array<i64: 2>, scalar_prefetch = 0 : i64, scratch_operands = 0 : i64, tpu.core_type = #tpu.core_type<tc>, window_params = [{transform_indices = @transform_0, window_bounds = array<i64: 1, 4, 256>}, {pipeline_mode = #tpu.pipeline_mode<synchronous>, transform_indices = @transform_1, window_bounds = array<i64: 8, 4>}, {pipeline_mode = #tpu.pipeline_mode<synchronous>, transform_indices = @transform_2, window_bounds = array<i64: 8, 1>}, {pipeline_mode = #tpu.pipeline_mode<synchronous>, transform_indices = @transform_3, window_bounds = array<i64: 8, 1>}, {pipeline_mode = #tpu.pipeline_mode<synchronous>, transform_indices = @transform_4, window_bounds = array<i64: 8, 9>}, {pipeline_mode = #tpu.pipeline_mode<synchronous>, transform_indices = @transform_5, window_bounds = array<i64: 8, 1>}, {pipeline_mode = #tpu.pipeline_mode<synchronous>, transform_indices = @transform_6, window_bounds = array<i64: 8, 1>}, {pipeline_mode = #tpu.pipeline_mode<synchronous>, transform_indices = @transform_7, window_bounds = array<i64: 8, 1>}, {pipeline_mode = #tpu.pipeline_mode<synchronous>, transform_indices = @transform_8, window_bounds = array<i64: 4, 8>}, {pipeline_mode = #tpu.pipeline_mode<synchronous>, transform_indices = @transform_9, window_bounds = array<i64: 4, 1>}, {pipeline_mode = #tpu.pipeline_mode<synchronous>, transform_indices = @transform_10, window_bounds = array<i64: 4, 1>}, {transform_indices = @transform_11, window_bounds = array<i64: 1, 4, 256>}]} {
    %c0 = arith.constant 0 : index
    %c0_0 = arith.constant 0 : index
    %c0_1 = arith.constant 0 : index
    %0 = vector.load %arg1[%c0, %c0_0, %c0_1] : memref<1x4x256xf32, #tpu.memory_space<vmem>>, vector<1x4x256xf32>
    %1 = vector.shape_cast %0 : vector<1x4x256xf32> to vector<4x256xf32>
    %2 = tpu.iota {dimensions = array<i32: 1>} : vector<1x256xi32>
    %c16_i32 = arith.constant 16 : i32
    %c0_i32 = arith.constant 0 : i32
    %3 = arith.cmpi eq, %c16_i32, %c0_i32 : i32
    %c1_i32 = arith.constant 1 : i32
    %4 = arith.select %3, %c1_i32, %c16_i32 : i32
    %5 = vector.broadcast %4 : i32 to vector<1x256xi32>
    %6 = arith.remsi %2, %5 : vector<1x256xi32>
    %c0_i32_2 = arith.constant 0 : i32
    %7 = vector.broadcast %c0_i32_2 : i32 to vector<1x256xi32>
    %8 = arith.cmpi ne, %6, %7 : vector<1x256xi32>
    %c0_i32_3 = arith.constant 0 : i32
    %9 = vector.broadcast %c0_i32_3 : i32 to vector<1x256xi32>
    %10 = arith.cmpi slt, %6, %9 : vector<1x256xi32>
    %c0_i32_4 = arith.constant 0 : i32
    %11 = arith.cmpi slt, %4, %c0_i32_4 : i32
    %12 = vector.broadcast %11 : i1 to vector<1x256xi1>
    %13 = vector.broadcast %12 : vector<1x256xi1> to vector<1x256xi1>
    %14 = arith.xori %10, %13 : vector<1x256xi1>
    %15 = arith.andi %14, %8 : vector<1x256xi1>
    %16 = vector.broadcast %4 : i32 to vector<1x256xi32>
    %17 = arith.addi %6, %16 : vector<1x256xi32>
    %18 = arith.select %15, %17, %6 : vector<1x256xi1>, vector<1x256xi32>
    %c0_i32_5 = arith.constant 0 : i32
    %19 = vector.broadcast %c0_i32_5 : i32 to vector<1x256xi32>
    %20 = arith.cmpi eq, %18, %19 : vector<1x256xi32>
    %c15_i32 = arith.constant 15 : i32
    %21 = vector.broadcast %c15_i32 : i32 to vector<1x256xi32>
    %22 = arith.cmpi eq, %18, %21 : vector<1x256xi32>
    %c16_i32_6 = arith.constant 16 : i32
    %23 = vector.broadcast %c16_i32_6 : i32 to vector<1x256xi32>
    %24 = arith.cmpi slt, %2, %23 : vector<1x256xi32>
    %c240_i32 = arith.constant 240 : i32
    %25 = vector.broadcast %c240_i32 : i32 to vector<1x256xi32>
    %26 = arith.cmpi sge, %2, %25 : vector<1x256xi32>
    %c0_7 = arith.constant 0 : index
    %c0_8 = arith.constant 0 : index
    %27 = vector.load %arg2[%c0_7, %c0_8] : memref<8x4xbf16, #tpu.memory_space<vmem>>, vector<8x4xbf16>
    %28 = arith.truncf %1 : vector<4x256xf32> to vector<4x256xbf16>
    %cst = arith.constant dense<0.000000e+00> : vector<8x256xf32>
    %29 = tpu.matmul %27, %28, %cst {dimension_numbers = #tpu.dot_dimension_numbers<[1], [0], [0], [1], [0, 0, 1, 1], [], []>} : vector<8x4xbf16>, vector<4x256xbf16>, vector<8x256xf32> -> vector<8x256xf32>
    %c0_9 = arith.constant 0 : index
    %c0_10 = arith.constant 0 : index
    %30 = vector.load %arg3[%c0_9, %c0_10] : memref<8x1xf32, #tpu.memory_space<vmem>>, vector<8x1xf32>
    %c0_11 = arith.constant 0 : index
    %c0_12 = arith.constant 0 : index
    %31 = vector.load %arg4[%c0_11, %c0_12] : memref<8x1xf32, #tpu.memory_space<vmem>>, vector<8x1xf32>
    %32 = vector.shape_cast %29 : vector<8x256xf32> to vector<1x8x256xf32>
    %cst_13 = arith.constant dense<0.000000e+00> : vector<1xf32>
    %33 = vector.multi_reduction <add>, %32, %cst_13 [1, 2] : vector<1x8x256xf32> to vector<1xf32>
    %34 = vector.shape_cast %33 : vector<1xf32> to vector<1x1x1xf32>
    %35 = vector.extract %34[0, 0, 0] : f32 from vector<1x1x1xf32>
    %36 = arith.mulf %29, %29 : vector<8x256xf32>
    %37 = vector.shape_cast %36 : vector<8x256xf32> to vector<1x8x256xf32>
    %cst_14 = arith.constant dense<0.000000e+00> : vector<1xf32>
    %38 = vector.multi_reduction <add>, %37, %cst_14 [1, 2] : vector<1x8x256xf32> to vector<1xf32>
    %39 = vector.shape_cast %38 : vector<1xf32> to vector<1x1x1xf32>
    %40 = vector.extract %39[0, 0, 0] : f32 from vector<1x1x1xf32>
    %cst_15 = arith.constant 4.8828125E-4 : f32
    %41 = arith.mulf %35, %cst_15 : f32
    %cst_16 = arith.constant 4.8828125E-4 : f32
    %42 = arith.mulf %40, %cst_16 : f32
    %43 = arith.mulf %41, %41 : f32
    %44 = arith.subf %42, %43 : f32
    %cst_17 = arith.constant 0.000000e+00 : f32
    %45 = arith.maximumf %44, %cst_17 : f32
    %cst_18 = arith.constant 9.99999974E-6 : f32
    %46 = arith.addf %45, %cst_18 : f32
    %47 = math.rsqrt %46 : f32
    %48 = vector.broadcast %47 : f32 to vector<8x1xf32>
    %49 = arith.mulf %30, %48 : vector<8x1xf32>
    %50 = vector.broadcast %41 : f32 to vector<8x1xf32>
    %51 = arith.mulf %50, %49 : vector<8x1xf32>
    %52 = arith.subf %31, %51 : vector<8x1xf32>
    %53 = vector.broadcast %49 : vector<8x1xf32> to vector<8x256xf32>
    %54 = arith.mulf %29, %53 : vector<8x256xf32>
    %55 = vector.broadcast %52 : vector<8x1xf32> to vector<8x256xf32>
    %56 = arith.addf %54, %55 : vector<8x256xf32>
    %cst_19 = arith.constant 0.000000e+00 : f32
    %57 = vector.broadcast %cst_19 : f32 to vector<8x256xf32>
    %58 = arith.cmpf oge, %56, %57 : vector<8x256xf32>
    %cst_20 = arith.constant 2.000000e-01 : f32
    %59 = vector.broadcast %cst_20 : f32 to vector<8x256xf32>
    %60 = arith.mulf %59, %56 : vector<8x256xf32>
    %61 = arith.select %58, %56, %60 : vector<8x256xi1>, vector<8x256xf32>
    %c1_i32_21 = arith.constant 1 : i32
    %62 = tpu.dynamic_rotate %61 by %c1_i32_21 dim 1 : vector<8x256xf32>, i32 -> vector<8x256xf32>
    %c255_i32 = arith.constant 255 : i32
    %63 = tpu.dynamic_rotate %61 by %c255_i32 dim 1 : vector<8x256xf32>, i32 -> vector<8x256xf32>
    %64 = vector.shape_cast %20 : vector<1x256xi1> to vector<1x256xi1>
    %65 = vector.broadcast %64 : vector<1x256xi1> to vector<8x256xi1>
    %66 = arith.select %65, %63, %62 : vector<8x256xi1>, vector<8x256xf32>
    %67 = vector.shape_cast %22 : vector<1x256xi1> to vector<1x256xi1>
    %68 = vector.broadcast %67 : vector<1x256xi1> to vector<8x256xi1>
    %69 = arith.select %68, %62, %63 : vector<8x256xi1>, vector<8x256xf32>
    %c0_22 = arith.constant 0 : index
    %c0_23 = arith.constant 0 : index
    %70 = vector.load %arg5[%c0_22, %c0_23] : memref<8x9xf32, #tpu.memory_space<vmem>>, vector<8x9xf32>
    %71 = vector.extract_strided_slice %70 {offsets = [0, 0], sizes = [8, 1], strides = [1, 1]} : vector<8x9xf32> to vector<8x1xf32>
    %72 = vector.broadcast %71 : vector<8x1xf32> to vector<8x256xf32>
    %73 = arith.mulf %72, %66 : vector<8x256xf32>
    %74 = vector.extract_strided_slice %70 {offsets = [0, 1], sizes = [8, 1], strides = [1, 1]} : vector<8x9xf32> to vector<8x1xf32>
    %75 = vector.broadcast %74 : vector<8x1xf32> to vector<8x256xf32>
    %76 = arith.mulf %75, %61 : vector<8x256xf32>
    %77 = arith.addf %73, %76 : vector<8x256xf32>
    %78 = vector.extract_strided_slice %70 {offsets = [0, 2], sizes = [8, 1], strides = [1, 1]} : vector<8x9xf32> to vector<8x1xf32>
    %79 = vector.broadcast %78 : vector<8x1xf32> to vector<8x256xf32>
    %80 = arith.mulf %79, %69 : vector<8x256xf32>
    %81 = arith.addf %77, %80 : vector<8x256xf32>
    %82 = vector.extract_strided_slice %70 {offsets = [0, 3], sizes = [8, 1], strides = [1, 1]} : vector<8x9xf32> to vector<8x1xf32>
    %83 = vector.broadcast %82 : vector<8x1xf32> to vector<8x256xf32>
    %84 = arith.mulf %83, %66 : vector<8x256xf32>
    %85 = vector.extract_strided_slice %70 {offsets = [0, 4], sizes = [8, 1], strides = [1, 1]} : vector<8x9xf32> to vector<8x1xf32>
    %86 = vector.broadcast %85 : vector<8x1xf32> to vector<8x256xf32>
    %87 = arith.mulf %86, %61 : vector<8x256xf32>
    %88 = arith.addf %84, %87 : vector<8x256xf32>
    %89 = vector.extract_strided_slice %70 {offsets = [0, 5], sizes = [8, 1], strides = [1, 1]} : vector<8x9xf32> to vector<8x1xf32>
    %90 = vector.broadcast %89 : vector<8x1xf32> to vector<8x256xf32>
    %91 = arith.mulf %90, %69 : vector<8x256xf32>
    %92 = arith.addf %88, %91 : vector<8x256xf32>
    %93 = vector.extract_strided_slice %70 {offsets = [0, 6], sizes = [8, 1], strides = [1, 1]} : vector<8x9xf32> to vector<8x1xf32>
    %94 = vector.broadcast %93 : vector<8x1xf32> to vector<8x256xf32>
    %95 = arith.mulf %94, %66 : vector<8x256xf32>
    %96 = vector.extract_strided_slice %70 {offsets = [0, 7], sizes = [8, 1], strides = [1, 1]} : vector<8x9xf32> to vector<8x1xf32>
    %97 = vector.broadcast %96 : vector<8x1xf32> to vector<8x256xf32>
    %98 = arith.mulf %97, %61 : vector<8x256xf32>
    %99 = arith.addf %95, %98 : vector<8x256xf32>
    %100 = vector.extract_strided_slice %70 {offsets = [0, 8], sizes = [8, 1], strides = [1, 1]} : vector<8x9xf32> to vector<8x1xf32>
    %101 = vector.broadcast %100 : vector<8x1xf32> to vector<8x256xf32>
    %102 = arith.mulf %101, %69 : vector<8x256xf32>
    %103 = arith.addf %99, %102 : vector<8x256xf32>
    %c240_i32_24 = arith.constant 240 : i32
    %104 = tpu.dynamic_rotate %81 by %c240_i32_24 dim 1 : vector<8x256xf32>, i32 -> vector<8x256xf32>
    %c16_i32_25 = arith.constant 16 : i32
    %105 = tpu.dynamic_rotate %81 by %c16_i32_25 dim 1 : vector<8x256xf32>, i32 -> vector<8x256xf32>
    %106 = vector.shape_cast %24 : vector<1x256xi1> to vector<1x256xi1>
    %107 = vector.broadcast %106 : vector<1x256xi1> to vector<8x256xi1>
    %108 = arith.select %107, %104, %105 : vector<8x256xi1>, vector<8x256xf32>
    %109 = arith.addf %108, %92 : vector<8x256xf32>
    %c16_i32_26 = arith.constant 16 : i32
    %110 = tpu.dynamic_rotate %103 by %c16_i32_26 dim 1 : vector<8x256xf32>, i32 -> vector<8x256xf32>
    %c240_i32_27 = arith.constant 240 : i32
    %111 = tpu.dynamic_rotate %103 by %c240_i32_27 dim 1 : vector<8x256xf32>, i32 -> vector<8x256xf32>
    %112 = vector.shape_cast %26 : vector<1x256xi1> to vector<1x256xi1>
    %113 = vector.broadcast %112 : vector<1x256xi1> to vector<8x256xi1>
    %114 = arith.select %113, %110, %111 : vector<8x256xi1>, vector<8x256xf32>
    %115 = arith.addf %109, %114 : vector<8x256xf32>
    %c0_28 = arith.constant 0 : index
    %c0_29 = arith.constant 0 : index
    %116 = vector.load %arg6[%c0_28, %c0_29] : memref<8x1xf32, #tpu.memory_space<vmem>>, vector<8x1xf32>
    %117 = vector.broadcast %116 : vector<8x1xf32> to vector<8x256xf32>
    %118 = arith.addf %115, %117 : vector<8x256xf32>
    %c0_30 = arith.constant 0 : index
    %c0_31 = arith.constant 0 : index
    %119 = vector.load %arg7[%c0_30, %c0_31] : memref<8x1xf32, #tpu.memory_space<vmem>>, vector<8x1xf32>
    %c0_32 = arith.constant 0 : index
    %c0_33 = arith.constant 0 : index
    %120 = vector.load %arg8[%c0_32, %c0_33] : memref<8x1xf32, #tpu.memory_space<vmem>>, vector<8x1xf32>
    %121 = vector.shape_cast %118 : vector<8x256xf32> to vector<1x8x256xf32>
    %cst_34 = arith.constant dense<0.000000e+00> : vector<1xf32>
    %122 = vector.multi_reduction <add>, %121, %cst_34 [1, 2] : vector<1x8x256xf32> to vector<1xf32>
    %123 = vector.shape_cast %122 : vector<1xf32> to vector<1x1x1xf32>
    %124 = vector.extract %123[0, 0, 0] : f32 from vector<1x1x1xf32>
    %125 = arith.mulf %118, %118 : vector<8x256xf32>
    %126 = vector.shape_cast %125 : vector<8x256xf32> to vector<1x8x256xf32>
    %cst_35 = arith.constant dense<0.000000e+00> : vector<1xf32>
    %127 = vector.multi_reduction <add>, %126, %cst_35 [1, 2] : vector<1x8x256xf32> to vector<1xf32>
    %128 = vector.shape_cast %127 : vector<1xf32> to vector<1x1x1xf32>
    %129 = vector.extract %128[0, 0, 0] : f32 from vector<1x1x1xf32>
    %cst_36 = arith.constant 4.8828125E-4 : f32
    %130 = arith.mulf %124, %cst_36 : f32
    %cst_37 = arith.constant 4.8828125E-4 : f32
    %131 = arith.mulf %129, %cst_37 : f32
    %132 = arith.mulf %130, %130 : f32
    %133 = arith.subf %131, %132 : f32
    %cst_38 = arith.constant 0.000000e+00 : f32
    %134 = arith.maximumf %133, %cst_38 : f32
    %cst_39 = arith.constant 9.99999974E-6 : f32
    %135 = arith.addf %134, %cst_39 : f32
    %136 = math.rsqrt %135 : f32
    %137 = vector.broadcast %136 : f32 to vector<8x1xf32>
    %138 = arith.mulf %119, %137 : vector<8x1xf32>
    %139 = vector.broadcast %130 : f32 to vector<8x1xf32>
    %140 = arith.mulf %139, %138 : vector<8x1xf32>
    %141 = arith.subf %120, %140 : vector<8x1xf32>
    %142 = vector.broadcast %138 : vector<8x1xf32> to vector<8x256xf32>
    %143 = arith.mulf %118, %142 : vector<8x256xf32>
    %144 = vector.broadcast %141 : vector<8x1xf32> to vector<8x256xf32>
    %145 = arith.addf %143, %144 : vector<8x256xf32>
    %cst_40 = arith.constant 0.000000e+00 : f32
    %146 = vector.broadcast %cst_40 : f32 to vector<8x256xf32>
    %147 = arith.cmpf oge, %145, %146 : vector<8x256xf32>
    %cst_41 = arith.constant 2.000000e-01 : f32
    %148 = vector.broadcast %cst_41 : f32 to vector<8x256xf32>
    %149 = arith.mulf %148, %145 : vector<8x256xf32>
    %150 = arith.select %147, %145, %149 : vector<8x256xi1>, vector<8x256xf32>
    %c0_42 = arith.constant 0 : index
    %c0_43 = arith.constant 0 : index
    %151 = vector.load %arg9[%c0_42, %c0_43] : memref<4x8xbf16, #tpu.memory_space<vmem>>, vector<4x8xbf16>
    %152 = arith.truncf %150 : vector<8x256xf32> to vector<8x256xbf16>
    %cst_44 = arith.constant dense<0.000000e+00> : vector<4x256xf32>
    %153 = tpu.matmul %151, %152, %cst_44 {dimension_numbers = #tpu.dot_dimension_numbers<[1], [0], [0], [1], [0, 0, 1, 1], [], []>} : vector<4x8xbf16>, vector<8x256xbf16>, vector<4x256xf32> -> vector<4x256xf32>
    %c0_45 = arith.constant 0 : index
    %c0_46 = arith.constant 0 : index
    %154 = vector.load %arg10[%c0_45, %c0_46] : memref<4x1xf32, #tpu.memory_space<vmem>>, vector<4x1xf32>
    %c0_47 = arith.constant 0 : index
    %c0_48 = arith.constant 0 : index
    %155 = vector.load %arg11[%c0_47, %c0_48] : memref<4x1xf32, #tpu.memory_space<vmem>>, vector<4x1xf32>
    %156 = vector.shape_cast %153 : vector<4x256xf32> to vector<1x4x256xf32>
    %cst_49 = arith.constant dense<0.000000e+00> : vector<1xf32>
    %157 = vector.multi_reduction <add>, %156, %cst_49 [1, 2] : vector<1x4x256xf32> to vector<1xf32>
    %158 = vector.shape_cast %157 : vector<1xf32> to vector<1x1x1xf32>
    %159 = vector.extract %158[0, 0, 0] : f32 from vector<1x1x1xf32>
    %160 = arith.mulf %153, %153 : vector<4x256xf32>
    %161 = vector.shape_cast %160 : vector<4x256xf32> to vector<1x4x256xf32>
    %cst_50 = arith.constant dense<0.000000e+00> : vector<1xf32>
    %162 = vector.multi_reduction <add>, %161, %cst_50 [1, 2] : vector<1x4x256xf32> to vector<1xf32>
    %163 = vector.shape_cast %162 : vector<1xf32> to vector<1x1x1xf32>
    %164 = vector.extract %163[0, 0, 0] : f32 from vector<1x1x1xf32>
    %cst_51 = arith.constant 9.765625E-4 : f32
    %165 = arith.mulf %159, %cst_51 : f32
    %cst_52 = arith.constant 9.765625E-4 : f32
    %166 = arith.mulf %164, %cst_52 : f32
    %167 = arith.mulf %165, %165 : f32
    %168 = arith.subf %166, %167 : f32
    %cst_53 = arith.constant 0.000000e+00 : f32
    %169 = arith.maximumf %168, %cst_53 : f32
    %cst_54 = arith.constant 9.99999974E-6 : f32
    %170 = arith.addf %169, %cst_54 : f32
    %171 = math.rsqrt %170 : f32
    %172 = vector.broadcast %171 : f32 to vector<4x1xf32>
    %173 = arith.mulf %154, %172 : vector<4x1xf32>
    %174 = vector.broadcast %165 : f32 to vector<4x1xf32>
    %175 = arith.mulf %174, %173 : vector<4x1xf32>
    %176 = arith.subf %155, %175 : vector<4x1xf32>
    %177 = vector.broadcast %173 : vector<4x1xf32> to vector<4x256xf32>
    %178 = arith.mulf %153, %177 : vector<4x256xf32>
    %179 = vector.broadcast %176 : vector<4x1xf32> to vector<4x256xf32>
    %180 = arith.addf %178, %179 : vector<4x256xf32>
    %181 = arith.addf %180, %1 : vector<4x256xf32>
    %c0_55 = arith.constant 0 : index
    %c0_56 = arith.constant 0 : index
    %c0_57 = arith.constant 0 : index
    %182 = vector.load %arg12[%c0_55, %c0_56, %c0_57] : memref<1x4x256xf32, #tpu.memory_space<vmem>>, vector<1x4x256xf32>
    %183 = vector.shape_cast %182 : vector<1x4x256xf32> to vector<4x256xf32>
    %184 = vector.shape_cast %181 : vector<4x256xf32> to vector<1x4x256xf32>
    tpu.vector_store %arg12[%c0_55, %c0_56, %c0_57], %184 {strides = array<i32>} : memref<1x4x256xf32, #tpu.memory_space<vmem>>, vector<1x4x256xf32>,
    return
  }
  func.func @transform_0(%arg0: i32) -> (i32, i32, i32) {
    %c0_i32 = arith.constant 0 : i32
    %c0_i32_0 = arith.constant 0 : i32
    %c0_i32_1 = arith.constant 0 : i32
    return %arg0, %c0_i32, %c0_i32_0 : i32, i32, i32
  }
  func.func @transform_1(%arg0: i32) -> (i32, i32) {
    %c0_i32 = arith.constant 0 : i32
    %c0_i32_0 = arith.constant 0 : i32
    %c0_i32_1 = arith.constant 0 : i32
    return %c0_i32, %c0_i32_0 : i32, i32
  }
  func.func @transform_2(%arg0: i32) -> (i32, i32) {
    %c0_i32 = arith.constant 0 : i32
    %c0_i32_0 = arith.constant 0 : i32
    %c0_i32_1 = arith.constant 0 : i32
    return %c0_i32, %c0_i32_0 : i32, i32
  }
  func.func @transform_3(%arg0: i32) -> (i32, i32) {
    %c0_i32 = arith.constant 0 : i32
    %c0_i32_0 = arith.constant 0 : i32
    %c0_i32_1 = arith.constant 0 : i32
    return %c0_i32, %c0_i32_0 : i32, i32
  }
  func.func @transform_4(%arg0: i32) -> (i32, i32) {
    %c0_i32 = arith.constant 0 : i32
    %c0_i32_0 = arith.constant 0 : i32
    %c0_i32_1 = arith.constant 0 : i32
    return %c0_i32, %c0_i32_0 : i32, i32
  }
  func.func @transform_5(%arg0: i32) -> (i32, i32) {
    %c0_i32 = arith.constant 0 : i32
    %c0_i32_0 = arith.constant 0 : i32
    %c0_i32_1 = arith.constant 0 : i32
    return %c0_i32, %c0_i32_0 : i32, i32
  }
  func.func @transform_6(%arg0: i32) -> (i32, i32) {
    %c0_i32 = arith.constant 0 : i32
    %c0_i32_0 = arith.constant 0 : i32
    %c0_i32_1 = arith.constant 0 : i32
    return %c0_i32, %c0_i32_0 : i32, i32
  }
  func.func @transform_7(%arg0: i32) -> (i32, i32) {
    %c0_i32 = arith.constant 0 : i32
    %c0_i32_0 = arith.constant 0 : i32
    %c0_i32_1 = arith.constant 0 : i32
    return %c0_i32, %c0_i32_0 : i32, i32
  }
  func.func @transform_8(%arg0: i32) -> (i32, i32) {
    %c0_i32 = arith.constant 0 : i32
    %c0_i32_0 = arith.constant 0 : i32
    %c0_i32_1 = arith.constant 0 : i32
    return %c0_i32, %c0_i32_0 : i32, i32
  }
  func.func @transform_9(%arg0: i32) -> (i32, i32) {
    %c0_i32 = arith.constant 0 : i32
    %c0_i32_0 = arith.constant 0 : i32
    %c0_i32_1 = arith.constant 0 : i32
    return %c0_i32, %c0_i32_0 : i32, i32
  }
  func.func @transform_10(%arg0: i32) -> (i32, i32) {
    %c0_i32 = arith.constant 0 : i32
    %c0_i32_0 = arith.constant 0 : i32
    %c0_i32_1 = arith.constant 0 : i32
    return %c0_i32, %c0_i32_0 : i32, i32
  }
  func.func @transform_11(%arg0: i32) -> (i32, i32, i32) {
    %c0_i32 = arith.constant 0 : i32
    %c0_i32_0 = arith.constant 0 : i32
    %c0_i32_1 = arith.constant 0 : i32
    return %arg0, %c0_i32, %c0_i32_0 : i32, i32, i32
  }
}

</mosaic_0001>

<llo_original>
// kernel: inverted_res_block.1
$region0: #{inverted_res_block.1}
  #allocation0 [shape = 'u32[]', space=smem, size = 0x4, offset = 0x4, fixed_abs, tag = 'smem constant byte address 0x4 - core index']
  #allocation1 [shape = 'u32[144,128]{1,0:T(1,128)}', space=vmem, size = 0x12000, scoped, tag = 'internal scratch']
  %s0 = inlined_call_operand.vmem [shape: f32[2,4,256], index: 0, kind: input, shape index: {}]
  %s1 = inlined_call_operand.vmem [shape: bf16[8,4], index: 1, kind: input, shape index: {}]
  %s2 = inlined_call_operand.vmem [shape: f32[8,1], index: 2, kind: input, shape index: {}]
  %s3 = inlined_call_operand.vmem [shape: f32[8,1], index: 3, kind: input, shape index: {}]
  %s4 = inlined_call_operand.vmem [shape: f32[8,9], index: 4, kind: input, shape index: {}]
  %s5 = inlined_call_operand.vmem [shape: f32[8,1], index: 5, kind: input, shape index: {}]
  %s6 = inlined_call_operand.vmem [shape: f32[8,1], index: 6, kind: input, shape index: {}]
  %s7 = inlined_call_operand.vmem [shape: f32[8,1], index: 7, kind: input, shape index: {}]
  %s8 = inlined_call_operand.vmem [shape: bf16[4,8], index: 8, kind: input, shape index: {}]
  %s9 = inlined_call_operand.vmem [shape: f32[4,1], index: 9, kind: input, shape index: {}]
  %s10 = inlined_call_operand.vmem [shape: f32[4,1], index: 10, kind: input, shape index: {}]
  %s11 = inlined_call_operand.vmem [shape: f32[2,4,256], index: 11, kind: output, shape index: {}]
  %s12 = sld [smem:[#allocation0]]
  $region77: #{inverted_res_block.1} parent=0
    _
  %s14 = ssub.s32 1, %s12
  %s15 = scalar_select 0, %s14, %s12
  loop: start=0, step=1, limit=4
  $region2: #{inverted_res_block.1} parent=0 // loop_pre_header
    _
  $region3: #{inverted_res_block.1} parent=0 // loop_header
    %s17 = sphi 0, %s21
    %p18 = scmp.ge.s32.totalorder %s17, 4
    %s27 = sphi 0, %s29
    %s30 = sphi 0, %s27
    %s31 = sphi 0, %s30
    %s47 = sphi 0, %s31
    %s51 = sphi 0, %s51
    %s53 = sphi 0, %s51
    %s54 = sphi 0, %s53
    %s68 = sphi 0, %s54
    %s72 = sphi 0, %s72
    %s74 = sphi 0, %s72
    %s75 = sphi 0, %s74
    %s89 = sphi 0, %s75
    %s93 = sphi 0, %s93
    %s95 = sphi 0, %s93
    %s96 = sphi 0, %s95
    %s110 = sphi 0, %s96
    %s114 = sphi 0, %s114
    %s116 = sphi 0, %s114
    %s117 = sphi 0, %s116
    %s131 = sphi 0, %s117
    %s135 = sphi 0, %s135
    %s137 = sphi 0, %s135
    %s138 = sphi 0, %s137
    %s152 = sphi 0, %s138
    %s156 = sphi 0, %s156
    %s158 = sphi 0, %s156
    %s159 = sphi 0, %s158
    %s173 = sphi 0, %s159
    %s177 = sphi 0, %s177
    %s179 = sphi 0, %s177
    %s180 = sphi 0, %s179
    %s194 = sphi 0, %s180
    %s198 = sphi 0, %s198
    %s200 = sphi 0, %s198
    %s201 = sphi 0, %s200
    %s215 = sphi 0, %s201
    %s219 = sphi 0, %s219
    %s221 = sphi 0, %s219
    %s222 = sphi 0, %s221
    %s236 = sphi 0, %s222
    %s240 = sphi 0, %s240
    %s242 = sphi 0, %s240
    %s243 = sphi 0, %s242
    %s257 = sphi 0, %s243
    %s263 = sphi 0, %s265
    %s266 = sphi 0, %s263
    %s267 = sphi 0, %s266
    %s283 = sphi 0, %s267
  $region4: #{inverted_res_block.1} parent=0 // loop_header_branch
    %20 = sbr.rel (%p18) target = $region8
  $region5: #{inverted_res_block.1} parent=0 // loop_body
    %s22 = ssub.s32 %s17, 1
    %s23 = ssub.s32 %s17, 2
    %s24 = sadd.s32 %s17, 1
    %s25 = ssub.s32 %s17, %s24
    %p26 = scmp.eq.s32.totalorder %s25, 0
    %s28 = sadd.s32 %s27, 1
    %s29 = scalar_select %p26, %s27, %s28
    %p32 = pneg %p26
    %p33 = scmp.eq.s32.totalorder %s17, 1
    %p34 = por %p32, %p33
    %p35 = scmp.ne.s32.totalorder %s27, %s30
    %p36 = scmp.eq.s32.totalorder %s17, 0
    %p37 = por %p35, %p36
    %p38 = scmp.ne.s32.totalorder %s27, %s30
    %p39 = scmp.eq.s32.totalorder %s22, 1
    %p40 = por %p38, %p39
    %p41 = scmp.ne.s32.totalorder %s30, %s31
    %p42 = scmp.eq.s32.totalorder %s22, 0
    %p43 = por %p41, %p42
    %p44 = scmp.ne.s32.totalorder %s30, %s31
    %p45 = scmp.eq.s32.totalorder %s23, 1
    %p46 = por %p44, %p45
    %p48 = scmp.ne.s32.totalorder %s31, %s47
    %p49 = scmp.eq.s32.totalorder %s23, 0
    %p50 = por %p48, %p49
    %s52 = sadd.s32 %s51, 1
    %p55 = scmp.eq.s32.totalorder %s17, 1
    %p56 = scmp.ne.s32.totalorder %s51, %s53
    %p57 = scmp.eq.s32.totalorder %s17, 0
    %p58 = por %p56, %p57
    %p59 = scmp.ne.s32.totalorder %s51, %s53
    %p60 = scmp.eq.s32.totalorder %s22, 1
    %p61 = por %p59, %p60
    %p62 = scmp.ne.s32.totalorder %s53, %s54
    %p63 = scmp.eq.s32.totalorder %s22, 0
    %p64 = por %p62, %p63
    %p65 = scmp.ne.s32.totalorder %s53, %s54
    %p66 = scmp.eq.s32.totalorder %s23, 1
    %p67 = por %p65, %p66
    %p69 = scmp.ne.s32.totalorder %s54, %s68
    %p70 = scmp.eq.s32.totalorder %s23, 0
    %p71 = por %p69, %p70
    %s73 = sadd.s32 %s72, 1
    %p76 = scmp.eq.s32.totalorder %s17, 1
    %p77 = scmp.ne.s32.totalorder %s72, %s74
    %p78 = scmp.eq.s32.totalorder %s17, 0
    %p79 = por %p77, %p78
    %p80 = scmp.ne.s32.totalorder %s72, %s74
    %p81 = scmp.eq.s32.totalorder %s22, 1
    %p82 = por %p80, %p81
    %p83 = scmp.ne.s32.totalorder %s74, %s75
    %p84 = scmp.eq.s32.totalorder %s22, 0
    %p85 = por %p83, %p84
    %p86 = scmp.ne.s32.totalorder %s74, %s75
    %p87 = scmp.eq.s32.totalorder %s23, 1
    %p88 = por %p86, %p87
    %p90 = scmp.ne.s32.totalorder %s75, %s89
    %p91 = scmp.eq.s32.totalorder %s23, 0
    %p92 = por %p90, %p91
    %s94 = sadd.s32 %s93, 1
    %p97 = scmp.eq.s32.totalorder %s17, 1
    %p98 = scmp.ne.s32.totalorder %s93, %s95
    %p99 = scmp.eq.s32.totalorder %s17, 0
    %p100 = por %p98, %p99
    %p101 = scmp.ne.s32.totalorder %s93, %s95
    %p102 = scmp.eq.s32.totalorder %s22, 1
    %p103 = por %p101, %p102
    %p104 = scmp.ne.s32.totalorder %s95, %s96
    %p105 = scmp.eq.s32.totalorder %s22, 0
    %p106 = por %p104, %p105
    %p107 = scmp.ne.s32.totalorder %s95, %s96
    %p108 = scmp.eq.s32.totalorder %s23, 1
    %p109 = por %p107, %p108
    %p111 = scmp.ne.s32.totalorder %s96, %s110
    %p112 = scmp.eq.s32.totalorder %s23, 0
    %p113 = por %p111, %p112
    %s115 = sadd.s32 %s114, 1
    %p118 = scmp.eq.s32.totalorder %s17, 1
    %p119 = scmp.ne.s32.totalorder %s114, %s116
    %p120 = scmp.eq.s32.totalorder %s17, 0
    %p121 = por %p119, %p120
    %p122 = scmp.ne.s32.totalorder %s114, %s116
    %p123 = scmp.eq.s32.totalorder %s22, 1
    %p124 = por %p122, %p123
    %p125 = scmp.ne.s32.totalorder %s116, %s117
    %p126 = scmp.eq.s32.totalorder %s22, 0
    %p127 = por %p125, %p126
    %p128 = scmp.ne.s32.totalorder %s116, %s117
    %p129 = scmp.eq.s32.totalorder %s23, 1
    %p130 = por %p128, %p129
    %p132 = scmp.ne.s32.totalorder %s117, %s131
    %p133 = scmp.eq.s32.totalorder %s23, 0
    %p134 = por %p132, %p133
    %s136 = sadd.s32 %s135, 1
    %p139 = scmp.eq.s32.totalorder %s17, 1
    %p140 = scmp.ne.s32.totalorder %s135, %s137
    %p141 = scmp.eq.s32.totalorder %s17, 0
    %p142 = por %p140, %p141
    %p143 = scmp.ne.s32.totalorder %s135, %s137
    %p144 = scmp.eq.s32.totalorder %s22, 1
    %p145 = por %p143, %p144
    %p146 = scmp.ne.s32.totalorder %s137, %s138
    %p147 = scmp.eq.s32.totalorder %s22, 0
    %p148 = por %p146, %p147
    %p149 = scmp.ne.s32.totalorder %s137, %s138
    %p150 = scmp.eq.s32.totalorder %s23, 1
    %p151 = por %p149, %p150
    %p153 = scmp.ne.s32.totalorder %s138, %s152
    %p154 = scmp.eq.s32.totalorder %s23, 0
    %p155 = por %p153, %p154
    %s157 = sadd.s32 %s156, 1
    %p160 = scmp.eq.s32.totalorder %s17, 1
    %p161 = scmp.ne.s32.totalorder %s156, %s158
    %p162 = scmp.eq.s32.totalorder %s17, 0
    %p163 = por %p161, %p162
    %p164 = scmp.ne.s32.totalorder %s156, %s158
    %p165 = scmp.eq.s32.totalorder %s22, 1
    %p166 = por %p164, %p165
    %p167 = scmp.ne.s32.totalorder %s158, %s159
    %p168 = scmp.eq.s32.totalorder %s22, 0
    %p169 = por %p167, %p168
    %p170 = scmp.ne.s32.totalorder %s158, %s159
    %p171 = scmp.eq.s32.totalorder %s23, 1
    %p172 = por %p170, %p171
    %p174 = scmp.ne.s32.totalorder %s159, %s173
    %p175 = scmp.eq.s32.totalorder %s23, 0
    %p176 = por %p174, %p175
    %s178 = sadd.s32 %s177, 1
    %p181 = scmp.eq.s32.totalorder %s17, 1
    %p182 = scmp.ne.s32.totalorder %s177, %s179
    %p183 = scmp.eq.s32.totalorder %s17, 0
    %p184 = por %p182, %p183
    %p185 = scmp.ne.s32.totalorder %s177, %s179
    %p186 = scmp.eq.s32.totalorder %s22, 1
    %p187 = por %p185, %p186
    %p188 = scmp.ne.s32.totalorder %s179, %s180
    %p189 = scmp.eq.s32.totalorder %s22, 0
    %p190 = por %p188, %p189
    %p191 = scmp.ne.s32.totalorder %s179, %s180
    %p192 = scmp.eq.s32.totalorder %s23, 1
    %p193 = por %p191, %p192
    %p195 = scmp.ne.s32.totalorder %s180, %s194
    %p196 = scmp.eq.s32.totalorder %s23, 0
    %p197 = por %p195, %p196
    %s199 = sadd.s32 %s198, 1
    %p202 = scmp.eq.s32.totalorder %s17, 1
    %p203 = scmp.ne.s32.totalorder %s198, %s200
    %p204 = scmp.eq.s32.totalorder %s17, 0
    %p205 = por %p203, %p204
    %p206 = scmp.ne.s32.totalorder %s198, %s200
    %p207 = scmp.eq.s32.totalorder %s22, 1
    %p208 = por %p206, %p207
    %p209 = scmp.ne.s32.totalorder %s200, %s201
    %p210 = scmp.eq.s32.totalorder %s22, 0
    %p211 = por %p209, %p210
    %p212 = scmp.ne.s32.totalorder %s200, %s201
    %p213 = scmp.eq.s32.totalorder %s23, 1
    %p214 = por %p212, %p213
    %p216 = scmp.ne.s32.totalorder %s201, %s215
    %p217 = scmp.eq.s32.totalorder %s23, 0
    %p218 = por %p216, %p217
    %s220 = sadd.s32 %s219, 1
    %p223 = scmp.eq.s32.totalorder %s17, 1
    %p224 = scmp.ne.s32.totalorder %s219, %s221
    %p225 = scmp.eq.s32.totalorder %s17, 0
    %p226 = por %p224, %p225
    %p227 = scmp.ne.s32.totalorder %s219, %s221
    %p228 = scmp.eq.s32.totalorder %s22, 1
    %p229 = por %p227, %p228
    %p230 = scmp.ne.s32.totalorder %s221, %s222
    %p231 = scmp.eq.s32.totalorder %s22, 0
    %p232 = por %p230, %p231
    %p233 = scmp.ne.s32.totalorder %s221, %s222
    %p234 = scmp.eq.s32.totalorder %s23, 1
    %p235 = por %p233, %p234
    %p237 = scmp.ne.s32.totalorder %s222, %s236
    %p238 = scmp.eq.s32.totalorder %s23, 0
    %p239 = por %p237, %p238
    %s241 = sadd.s32 %s240, 1
    %p244 = scmp.eq.s32.totalorder %s17, 1
    %p245 = scmp.ne.s32.totalorder %s240, %s242
    %p246 = scmp.eq.s32.totalorder %s17, 0
    %p247 = por %p245, %p246
    %p248 = scmp.ne.s32.totalorder %s240, %s242
    %p249 = scmp.eq.s32.totalorder %s22, 1
    %p250 = por %p248, %p249
    %p251 = scmp.ne.s32.totalorder %s242, %s243
    %p252 = scmp.eq.s32.totalorder %s22, 0
    %p253 = por %p251, %p252
    %p254 = scmp.ne.s32.totalorder %s242, %s243
    %p255 = scmp.eq.s32.totalorder %s23, 1
    %p256 = por %p254, %p255
    %p258 = scmp.ne.s32.totalorder %s243, %s257
    %p259 = scmp.eq.s32.totalorder %s23, 0
    %p260 = por %p258, %p259
    %s261 = ssub.s32 %s17, %s24
    %p262 = scmp.eq.s32.totalorder %s261, 0
    %s264 = sadd.s32 %s263, 1
    %s265 = scalar_select %p262, %s263, %s264
    %p268 = pneg %p262
    %p269 = scmp.eq.s32.totalorder %s17, 1
    %p270 = por %p268, %p269
    %p271 = scmp.ne.s32.totalorder %s263, %s266
    %p272 = scmp.eq.s32.totalorder %s17, 0
    %p273 = por %p271, %p272
    %p274 = scmp.ne.s32.totalorder %s263, %s266
    %p275 = scmp.eq.s32.totalorder %s22, 1
    %p276 = por %p274, %p275
    %p277 = scmp.ne.s32.totalorder %s266, %s267
    %p278 = scmp.eq.s32.totalorder %s22, 0
    %p279 = por %p277, %p278
    %p280 = scmp.ne.s32.totalorder %s266, %s267
    %p281 = scmp.eq.s32.totalorder %s23, 1
    %p282 = por %p280, %p281
    %p284 = scmp.ne.s32.totalorder %s267, %s283
    %p285 = scmp.eq.s32.totalorder %s23, 0
    %p286 = por %p284, %p285
    %p287 = scmp.le.s32.totalorder 1, %s17
    %p288 = scmp.lt.s32.totalorder %s17, 3
    %p289 = pnand %p287, %p288
    %p290 = pneg %p289
    // Predicated region
    $region9: #{inverted_res_block.1} parent=5 // pred_check
      _
    $region10: #{inverted_res_block.1} parent=5 // pred_check_branch
      %292 = sbr.rel (%p289) target = $region12
    $region11: #{inverted_res_block.1} parent=5 // pred_region
      %s293 = ssub.s32 %s17, 1
      // Predicated region
      $region13: #{inverted_res_block.1} parent=11 // pred_check
        %p294 = pneg %p64
      $region14: #{inverted_res_block.1} parent=11 // pred_check_branch
        %296 = sbr.rel (%p294) target = $region16
      $region15: #{inverted_res_block.1} parent=11 // pred_region
        _
      $region16: #{inverted_res_block.1} parent=11 // pred_fallthru
        _
      // Predicated region
      $region17: #{inverted_res_block.1} parent=11 // pred_check
        %p297 = pneg %p85
      $region18: #{inverted_res_block.1} parent=11 // pred_check_branch
        %299 = sbr.rel (%p297) target = $region20
      $region19: #{inverted_res_block.1} parent=11 // pred_region
        _
      $region20: #{inverted_res_block.1} parent=11 // pred_fallthru
        _
      // Predicated region
      $region21: #{inverted_res_block.1} parent=11 // pred_check
        %p300 = pneg %p106
      $region22: #{inverted_res_block.1} parent=11 // pred_check_branch
        %302 = sbr.rel (%p300) target = $region24
      $region23: #{inverted_res_block.1} parent=11 // pred_region
        _
      $region24: #{inverted_res_block.1} parent=11 // pred_fallthru
        _
      // Predicated region
      $region25: #{inverted_res_block.1} parent=11 // pred_check
        %p303 = pneg %p127
      $region26: #{inverted_res_block.1} parent=11 // pred_check_branch
        %305 = sbr.rel (%p303) target = $region28
      $region27: #{inverted_res_block.1} parent=11 // pred_region
        _
      $region28: #{inverted_res_block.1} parent=11 // pred_fallthru
        _
      // Predicated region
      $region29: #{inverted_res_block.1} parent=11 // pred_check
        %p306 = pneg %p148
      $region30: #{inverted_res_block.1} parent=11 // pred_check_branch
        %308 = sbr.rel (%p306) target = $region32
      $region31: #{inverted_res_block.1} parent=11 // pred_region
        _
      $region32: #{inverted_res_block.1} parent=11 // pred_fallthru
        _
      // Predicated region
      $region33: #{inverted_res_block.1} parent=11 // pred_check
        %p309 = pneg %p169
      $region34: #{inverted_res_block.1} parent=11 // pred_check_branch
        %311 = sbr.rel (%p309) target = $region36
      $region35: #{inverted_res_block.1} parent=11 // pred_region
        _
      $region36: #{inverted_res_block.1} parent=11 // pred_fallthru
        _
      // Predicated region
      $region37: #{inverted_res_block.1} parent=11 // pred_check
        %p312 = pneg %p190
      $region38: #{inverted_res_block.1} parent=11 // pred_check_branch
        %314 = sbr.rel (%p312) target = $region40
      $region39: #{inverted_res_block.1} parent=11 // pred_region
        _
      $region40: #{inverted_res_block.1} parent=11 // pred_fallthru
        _
      // Predicated region
      $region41: #{inverted_res_block.1} parent=11 // pred_check
        %p315 = pneg %p211
      $region42: #{inverted_res_block.1} parent=11 // pred_check_branch
        %317 = sbr.rel (%p315) target = $region44
      $region43: #{inverted_res_block.1} parent=11 // pred_region
        _
      $region44: #{inverted_res_block.1} parent=11 // pred_fallthru
        _
      // Predicated region
      $region45: #{inverted_res_block.1} parent=11 // pred_check
        %p318 = pneg %p232
      $region46: #{inverted_res_block.1} parent=11 // pred_check_branch
        %320 = sbr.rel (%p318) target = $region48
      $region47: #{inverted_res_block.1} parent=11 // pred_region
        _
      $region48: #{inverted_res_block.1} parent=11 // pred_fallthru
        _
      // Predicated region
      $region49: #{inverted_res_block.1} parent=11 // pred_check
        %p321 = pneg %p253
      $region50: #{inverted_res_block.1} parent=11 // pred_check_branch
        %323 = sbr.rel (%p321) target = $region52
      $region51: #{inverted_res_block.1} parent=11 // pred_region
        _
      $region52: #{inverted_res_block.1} parent=11 // pred_fallthru
        _
    $region12: #{inverted_res_block.1} parent=5 // pred_fallthru
      _
    %p324 = scmp.lt.s32.totalorder %s17, 2
    // Predicated region
    $region53: #{inverted_res_block.1} parent=5 // pred_check
      %p325 = pneg %p324
    $region54: #{inverted_res_block.1} parent=5 // pred_check_branch
      %327 = sbr.rel (%p325) target = $region56
    $region55: #{inverted_res_block.1} parent=5 // pred_region
      // Predicated region
      $region57: #{inverted_res_block.1} parent=55 // pred_check
        %p328 = pneg %p37
      $region58: #{inverted_res_block.1} parent=55 // pred_check_branch
        %330 = sbr.rel (%p328) target = $region60
      $region59: #{inverted_res_block.1} parent=55 // pred_region
        %p331 = scmp.lt.s32.totalorder %s17, 1
        %s332 = scalar_select %p331, %s17, 1
        %s333 = smul.addr %s332, 2
        %s334 = smul.addr %s333, 4
        %s335 = scalar_lea.vmem %s0, %s334
      $region60: #{inverted_res_block.1} parent=55 // pred_fallthru
        _
    $region56: #{inverted_res_block.1} parent=5 // pred_fallthru
      _
    %p336 = scmp.le.s32.totalorder 1, %s17
    %p337 = scmp.lt.s32.totalorder %s17, 3
    %p338 = pnand %p336, %p337
    %p339 = pneg %p338
    // Predicated region
    $region61: #{inverted_res_block.1} parent=5 // pred_check
      _
    $region62: #{inverted_res_block.1} parent=5 // pred_check_branch
      %341 = sbr.rel (%p338) target = $region64
    $region63: #{inverted_res_block.1} parent=5 // pred_region
      %s342 = ssub.s32 %s17, 1
      %p343 = scmp.lt.s32.totalorder %s22, 1
      %s344 = scalar_select %p343, %s22, 1
      %s345 = smul.addr %s344, 2
      %s346 = smul.addr %s345, 4
      %s347 = scalar_lea.vmem %s0, %s346
      %p348 = pneg %p43
      %p349 = pneg %p40
      %p350 = pneg %p64
      %p351 = pneg %p61
      %p352 = pneg %p85
      %p353 = pneg %p82
      %p354 = pneg %p106
      %p355 = pneg %p103
      %p356 = pneg %p127
      %p357 = pneg %p124
      %p358 = pneg %p148
      %p359 = pneg %p145
      %p360 = pneg %p169
      %p361 = pneg %p166
      %p362 = pneg %p190
      %p363 = pneg %p187
      %p364 = pneg %p211
      %p365 = pneg %p208
      %p366 = pneg %p232
      %p367 = pneg %p229
      %p368 = pneg %p253
      %p369 = pneg %p250
      %p370 = pneg %p279
      %p371 = pneg %p276
      %p372 = scmp.lt.s32.totalorder %s22, 1
      %s373 = scalar_select %p372, %s22, 1
      %s374 = smul.addr %s373, 2
      %s375 = smul.addr %s374, 4
      %s376 = scalar_lea.vmem %s11, %s375
      %p377 = scmp.lt.s32.totalorder %s22, 1
      %s378 = scalar_select %p377, %s22, 1
      %s379 = smul.addr %s378, 2
      %s380 = smul.addr %s379, 4
      %s381 = scalar_lea.vmem %s0, %s380
      %p382 = scmp.lt.s32.totalorder %s22, 1
      %s383 = scalar_select %p382, %s22, 1
      %s384 = smul.addr %s383, 2
      %s385 = smul.addr %s384, 4
      %s386 = scalar_lea.vmem %s11, %s385
      %v388 = vld [vmem:[%s381] sm:$0xff]
      %v389 = vlaneseq
      %v390 = vand.u32 %v389, 127
      %v391 = vadd.s32 %v390, 128
      %vm392 = vcmp.lt.s32.totalorder %v390, 0
      %v393 = vsub.s32 0, %v390
      %v394 = vsel %vm392, %v393, %v390
      %v395 = vshrl.u32 %v394, 4
      %v396 = vand.u32 %v394, 15
      %v397 = vsub.s32 0, %v396
      %v398 = vsel %vm392, %v397, %v396
      %vm399 = vcmp.lt.s32.totalorder %v391, 0
      %v400 = vsub.s32 0, %v391
      %v401 = vsel %vm399, %v400, %v391
      %v402 = vshrl.u32 %v401, 4
      %v403 = vand.u32 %v401, 15
      %v404 = vsub.s32 0, %v403
      %v405 = vsel %vm399, %v404, %v403
      %vm406 = vcmp.ne.s32.totalorder %v398, 0
      %vm407 = vcmp.ne.s32.totalorder %v405, 0
      %vm408 = vcmp.lt.s32.totalorder %v398, 0
      %vm409 = vcmp.lt.s32.totalorder %v405, 0
      %vm410 = vmand %vm408, %vm406
      %vm411 = vmand %vm409, %vm407
      %v412 = vadd.s32 %v398, 16
      %v413 = vadd.s32 %v405, 16
      %v414 = vsel %vm410, %v412, %v398
      %v415 = vsel %vm411, %v413, %v405
      %vm416 = vcmp.eq.s32.totalorder %v414, 0
      %vm417 = vcmp.eq.s32.totalorder %v415, 0
      %vm418 = vcmp.eq.s32.totalorder %v414, 15
      %vm419 = vcmp.eq.s32.totalorder %v415, 15
      %vm420 = vcmp.lt.s32.totalorder %v390, 16
      %vm421 = vcmp.lt.s32.totalorder %v391, 16
      %vm422 = vcmp.ge.s32.totalorder %v390, 240
      %vm423 = vcmp.ge.s32.totalorder %v391, 240
      %v424 = vld [vmem:[%s1] sm:$0xf]
      %v426 = vcombine.high %v388, %v388
      %v428 = vpack.c.bf16 %v388, %v388
      %v429 = vpack.c.bf16 %v426, %v426
      %vm430 = vcmask 31744
      %v432 = vsel %vm430, %v424, 0
      %vm434 = vcmask 1041408
      %v436 = vsel %vm434, %v428, 0
      %v439 = vsel %vm434, %v429, 0
      %441 = vmatprep.subr.bf16.mxu0 %v439
      %442 = vmatpush1.bf16.msra.mxu0 %v436
      %443 = vmatprep.subr.bf16.mxu0 0
      %444 = vmatpush1.bf16.msra.mxu0 0
      %445 = vmatprep.subr.bf16.mxu0 0
      %446 = vmatpush1.bf16.msra.mxu0 0
      %447 = vmatprep.subr.bf16.mxu0 0
      %448 = vmatpush1.bf16.msra.mxu0 0
      %449 = vmatprep.subr.bf16.mxu0 0
      %450 = vmatpush1.bf16.msra.mxu0 0
      %451 = vmatprep.subr.bf16.mxu0 0
      %452 = vmatpush1.bf16.msra.mxu0 0
      %453 = vmatprep.subr.bf16.mxu0 0
      %454 = vmatpush1.bf16.msra.mxu0 0
      %455 = vmatprep.subr.bf16.mxu0 0
      %456 = vmatpush1.bf16.msra.mxu0 0
      %457 = vmatprep.subr.bf16.mxu0 0
      %458 = vmatpush1.bf16.msra.mxu0 0
      %459 = vmatprep.subr.bf16.mxu0 0
      %460 = vmatpush1.bf16.msra.mxu0 0
      %461 = vmatprep.subr.bf16.mxu0 0
      %462 = vmatpush1.bf16.msra.mxu0 0
      %463 = vmatprep.subr.bf16.mxu0 0
      %464 = vmatpush1.bf16.msra.mxu0 0
      %465 = vmatprep.subr.bf16.mxu0 0
      %466 = vmatpush1.bf16.msra.mxu0 0
      %467 = vmatprep.subr.bf16.mxu0 0
      %468 = vmatpush1.bf16.msra.mxu0 0
      %469 = vmatprep.subr.bf16.mxu0 0
      %470 = vmatpush1.bf16.msra.mxu0 0
      %471 = vmatprep.subr.bf16.mxu0 0
      %472 = vmatpush1.bf16.msra.mxu0 0
      %473 = vmatprep.mubr.bf16.mxu0 0
      %474 = vmatmul.mubr.bf16.gmra.mrb[0].mxu0 %v432
      %v475 = vpop.f32.mrb[0].mxu0
      %v476 = vadd.f32 0.0, %v475
      %v477 = vpop.f32.mrb[0].mxu0
      %v478 = vadd.f32 0.0, %v477
      %v479 = vpop.f32.mrb[0].mxu0
      %v480 = vpop.f32.mrb[0].mxu0
      %481 = vdwg.mxu0
      %v482 = vld [vmem:[%s2] sm:$0xff]
      %v483 = vld [vmem:[%s3] sm:$0xff]
      %v484 = vadd.f32 %v476, %v478
      %485 = vadd.xlane.f32.xlu0 %v484
      %v486 = vpop.xlane.xlu0 %485
      %v487 = vrot.slane %v486, 4
      %v488 = vadd.f32 %v486, %v487
      %v489 = vrot.slane %v488, 2
      %v490 = vadd.f32 %v488, %v489
      %v491 = vrot.slane %v490, 1
      %v492 = vadd.f32 %v490, %v491
      %s493 = vtos %v492
      %v494 = vmul.f32 %v476, %v476
      %v495 = vmul.f32 %v478, %v478
      %v496 = vadd.f32 %v494, %v495
      %497 = vadd.xlane.f32.xlu0 %v496
      %v498 = vpop.xlane.xlu0 %497
      %v499 = vrot.slane %v498, 4
      %v500 = vadd.f32 %v498, %v499
      %v501 = vrot.slane %v500, 2
      %v502 = vadd.f32 %v500, %v501
      %v503 = vrot.slane %v502, 1
      %v504 = vadd.f32 %v502, %v503
      %s505 = vtos %v504
      %s506 = smul.f32 %s493, 0.00048828125
      %s507 = smul.f32 %s505, 0.00048828125
      %s508 = smul.f32 %s506, %s506
      %s509 = ssub.f32 %s507, %s508
      %s510 = smax.f32 %s509, 0.0
      %s511 = sadd.f32 %s510, 1e-05
      %v512 = vstv %s511
      %v513 = vrsqrt.pop %v512
      %s514 = vtos %v513
      %v515 = vstv %s514
      %v516 = vmul.f32 %v482, %v515
      %v517 = vstv %s506
      %v518 = vmul.f32 %v517, %v516
      %v519 = vsub.f32 %v483, %v518
      %521 = vset.pattern.permute.xlu0 0
      %522 = vperm.xlu0 %521, %v516
      %v523 = vpop.permute.xlu0 %522
      %v525 = vmul.f32 %v476, %v523
      %v526 = vmul.f32 %v478, %v523
      %528 = vset.pattern.permute.xlu0 0
      %529 = vperm.xlu0 %528, %v519
      %v530 = vpop.permute.xlu0 %529
      %v532 = vadd.f32 %v525, %v530
      %v533 = vadd.f32 %v526, %v530
      %vm534 = vcmp.ge.f32.partialorder %v532, 0.0
      %vm535 = vcmp.ge.f32.partialorder %v533, 0.0
      %v536 = vmul.f32 %v532, 0.2
      %v537 = vmul.f32 %v533, 0.2
      %v538 = vsel %vm534, %v532, %v536
      %v539 = vsel %vm535, %v533, %v537
      %540 = vrot.lane.b32.xlu0 %v538, 1
      %v541 = vpop.permute.xlu0 %540
      %542 = vrot.lane.b32.xlu0 %v539, 1
      %v543 = vpop.permute.xlu0 %542
      %vm544 = vcmp.lt.s32.totalorder %v390, 1
      %v545 = vsel %vm544, %v541, %v543
      %v546 = vsel %vm544, %v543, %v541
      %547 = vrot.lane.b32.xlu0 %v538, 127
      %v548 = vpop.permute.xlu0 %547
      %549 = vrot.lane.b32.xlu0 %v539, 127
      %v550 = vpop.permute.xlu0 %549
      %vm551 = vcmp.lt.s32.totalorder %v390, 127
      %v552 = vsel %vm551, %v548, %v550
      %v553 = vsel %vm551, %v550, %v548
      %v554 = vsel %vm416, 1, 0
      %v555 = vsel %vm417, 1, 0
      %vm556 = vcmp.eq.s32.totalorder %v554, 1
      %vm557 = vcmp.eq.s32.totalorder %v555, 1
      %v558 = vsel %vm556, %v552, %v546
      %v559 = vsel %vm557, %v553, %v545
      %v560 = vsel %vm418, 1, 0
      %v561 = vsel %vm419, 1, 0
      %vm562 = vcmp.eq.s32.totalorder %v560, 1
      %vm563 = vcmp.eq.s32.totalorder %v561, 1
      %v564 = vsel %vm562, %v546, %v552
      %v565 = vsel %vm563, %v545, %v553
      %v566 = vld [vmem:[%s4] sm:$0xff]
      %568 = vset.pattern.permute.xlu0 0
      %569 = vperm.xlu0 %568, %v566
      %v570 = vpop.permute.xlu0 %569
      %v572 = vmul.f32 %v570, %v558
      %v573 = vmul.f32 %v570, %v559
      %574 = vset.pattern.permute.xlu0 1
      %575 = vperm.xlu0 %574, %v566
      %v576 = vpop.permute.xlu0 %575
      %v578 = vmul.f32 %v576, %v538
      %v579 = vmul.f32 %v576, %v539
      %v580 = vadd.f32 %v572, %v578
      %v581 = vadd.f32 %v573, %v579
      %582 = vset.pattern.permute.xlu0 2
      %583 = vperm.xlu0 %582, %v566
      %v584 = vpop.permute.xlu0 %583
      %v586 = vmul.f32 %v584, %v564
      %v587 = vmul.f32 %v584, %v565
      %v588 = vadd.f32 %v580, %v586
      %v589 = vadd.f32 %v581, %v587
      %590 = vset.pattern.permute.xlu0 3
      %591 = vperm.xlu0 %590, %v566
      %v592 = vpop.permute.xlu0 %591
      %v594 = vmul.f32 %v592, %v558
      %v595 = vmul.f32 %v592, %v559
      %596 = vset.pattern.permute.xlu0 4
      %597 = vperm.xlu0 %596, %v566
      %v598 = vpop.permute.xlu0 %597
      %v600 = vmul.f32 %v598, %v538
      %v601 = vmul.f32 %v598, %v539
      %v602 = vadd.f32 %v594, %v600
      %v603 = vadd.f32 %v595, %v601
      %604 = vset.pattern.permute.xlu0 5
      %605 = vperm.xlu0 %604, %v566
      %v606 = vpop.permute.xlu0 %605
      %v608 = vmul.f32 %v606, %v564
      %v609 = vmul.f32 %v606, %v565
      %v610 = vadd.f32 %v602, %v608
      %v611 = vadd.f32 %v603, %v609
      %612 = vset.pattern.permute.xlu0 6
      %613 = vperm.xlu0 %612, %v566
      %v614 = vpop.permute.xlu0 %613
      %v616 = vmul.f32 %v614, %v558
      %v617 = vmul.f32 %v614, %v559
      %618 = vset.pattern.permute.xlu0 7
      %619 = vperm.xlu0 %618, %v566
      %v620 = vpop.permute.xlu0 %619
      %v622 = vmul.f32 %v620, %v538
      %v623 = vmul.f32 %v620, %v539
      %v624 = vadd.f32 %v616, %v622
      %v625 = vadd.f32 %v617, %v623
      %626 = vset.pattern.permute.xlu0 8
      %627 = vperm.xlu0 %626, %v566
      %v628 = vpop.permute.xlu0 %627
      %v630 = vmul.f32 %v628, %v564
      %v631 = vmul.f32 %v628, %v565
      %v632 = vadd.f32 %v624, %v630
      %v633 = vadd.f32 %v625, %v631
      %634 = vrot.lane.b32.xlu0 %v588, 112
      %v635 = vpop.permute.xlu0 %634
      %636 = vrot.lane.b32.xlu0 %v589, 112
      %v637 = vpop.permute.xlu0 %636
      %vm638 = vcmp.lt.s32.totalorder %v390, 112
      %v639 = vsel %vm638, %v635, %v637
      %v640 = vsel %vm638, %v637, %v635
      %641 = vrot.lane.b32.xlu0 %v588, 16
      %v642 = vpop.permute.xlu0 %641
      %643 = vrot.lane.b32.xlu0 %v589, 16
      %v644 = vpop.permute.xlu0 %643
      %v645 = vsel %vm420, %v642, %v644
      %v646 = vsel %vm420, %v644, %v642
      %v647 = vsel %vm420, 1, 0
      %v648 = vsel %vm421, 1, 0
      %vm649 = vcmp.eq.s32.totalorder %v647, 1
      %vm650 = vcmp.eq.s32.totalorder %v648, 1
      %v651 = vsel %vm649, %v639, %v646
      %v652 = vsel %vm650, %v640, %v645
      %v653 = vadd.f32 %v651, %v610
      %v654 = vadd.f32 %v652, %v611
      %655 = vrot.lane.b32.xlu0 %v632, 16
      %v656 = vpop.permute.xlu0 %655
      %657 = vrot.lane.b32.xlu0 %v633, 16
      %v658 = vpop.permute.xlu0 %657
      %v659 = vsel %vm420, %v656, %v658
      %v660 = vsel %vm420, %v658, %v656
      %661 = vrot.lane.b32.xlu0 %v632, 112
      %v662 = vpop.permute.xlu0 %661
      %663 = vrot.lane.b32.xlu0 %v633, 112
      %v664 = vpop.permute.xlu0 %663
      %v665 = vsel %vm638, %v662, %v664
      %v666 = vsel %vm638, %v664, %v662
      %v667 = vsel %vm422, 1, 0
      %v668 = vsel %vm423, 1, 0
      %vm669 = vcmp.eq.s32.totalorder %v667, 1
      %vm670 = vcmp.eq.s32.totalorder %v668, 1
      %v671 = vsel %vm669, %v660, %v665
      %v672 = vsel %vm670, %v659, %v666
      %v673 = vadd.f32 %v653, %v671
      %v674 = vadd.f32 %v654, %v672
      %v675 = vld [vmem:[%s5] sm:$0xff]
      %677 = vset.pattern.permute.xlu0 0
      %678 = vperm.xlu0 %677, %v675
      %v679 = vpop.permute.xlu0 %678
      %v681 = vadd.f32 %v673, %v679
      %v682 = vadd.f32 %v674, %v679
      %v683 = vld [vmem:[%s6] sm:$0xff]
      %v684 = vld [vmem:[%s7] sm:$0xff]
      %v685 = vadd.f32 %v681, %v682
      %686 = vadd.xlane.f32.xlu0 %v685
      %v687 = vpop.xlane.xlu0 %686
      %v688 = vrot.slane %v687, 4
      %v689 = vadd.f32 %v687, %v688
      %v690 = vrot.slane %v689, 2
      %v691 = vadd.f32 %v689, %v690
      %v692 = vrot.slane %v691, 1
      %v693 = vadd.f32 %v691, %v692
      %s694 = vtos %v693
      %v695 = vmul.f32 %v681, %v681
      %v696 = vmul.f32 %v682, %v682
      %v697 = vadd.f32 %v695, %v696
      %698 = vadd.xlane.f32.xlu0 %v697
      %v699 = vpop.xlane.xlu0 %698
      %v700 = vrot.slane %v699, 4
      %v701 = vadd.f32 %v699, %v700
      %v702 = vrot.slane %v701, 2
      %v703 = vadd.f32 %v701, %v702
      %v704 = vrot.slane %v703, 1
      %v705 = vadd.f32 %v703, %v704
      %s706 = vtos %v705
      %s707 = smul.f32 %s694, 0.00048828125
      %s708 = smul.f32 %s706, 0.00048828125
      %s709 = smul.f32 %s707, %s707
      %s710 = ssub.f32 %s708, %s709
      %s711 = smax.f32 %s710, 0.0
      %s712 = sadd.f32 %s711, 1e-05
      %v713 = vstv %s712
      %v714 = vrsqrt.pop %v713
      %s715 = vtos %v714
      %v716 = vstv %s715
      %v717 = vmul.f32 %v683, %v716
      %v718 = vstv %s707
      %v719 = vmul.f32 %v718, %v717
      %v720 = vsub.f32 %v684, %v719
      %722 = vset.pattern.permute.xlu0 0
      %723 = vperm.xlu0 %722, %v717
      %v724 = vpop.permute.xlu0 %723
      %v726 = vmul.f32 %v681, %v724
      %v727 = vmul.f32 %v682, %v724
      %729 = vset.pattern.permute.xlu0 0
      %730 = vperm.xlu0 %729, %v720
      %v731 = vpop.permute.xlu0 %730
      %v733 = vadd.f32 %v726, %v731
      %v734 = vadd.f32 %v727, %v731
      %vm735 = vcmp.ge.f32.partialorder %v733, 0.0
      %vm736 = vcmp.ge.f32.partialorder %v734, 0.0
      %v737 = vmul.f32 %v733, 0.2
      %v738 = vmul.f32 %v734, 0.2
      %v739 = vsel %vm735, %v733, %v737
      %v740 = vsel %vm736, %v734, %v738
      %v741 = vld [vmem:[%s8] sm:$0x3]
      %v742 = vpack.c.bf16 %v739, %v739
      %v743 = vpack.c.bf16 %v740, %v740
      %vm744 = vcmask 64512
      %v746 = vsel %vm744, %v741, 0
      %vm748 = vcmask 1043456
      %v750 = vsel %vm748, %v742, 0
      %v753 = vsel %vm748, %v743, 0
      %755 = vmatprep.subr.bf16.mxu0 %v753
      %756 = vmatpush1.bf16.msra.mxu0 %v750
      %757 = vmatprep.subr.bf16.mxu0 0
      %758 = vmatpush1.bf16.msra.mxu0 0
      %759 = vmatprep.subr.bf16.mxu0 0
      %760 = vmatpush1.bf16.msra.mxu0 0
      %761 = vmatprep.subr.bf16.mxu0 0
      %762 = vmatpush1.bf16.msra.mxu0 0
      %763 = vmatprep.subr.bf16.mxu0 0
      %764 = vmatpush1.bf16.msra.mxu0 0
      %765 = vmatprep.subr.bf16.mxu0 0
      %766 = vmatpush1.bf16.msra.mxu0 0
      %767 = vmatprep.subr.bf16.mxu0 0
      %768 = vmatpush1.bf16.msra.mxu0 0
      %769 = vmatprep.subr.bf16.mxu0 0
      %770 = vmatpush1.bf16.msra.mxu0 0
      %771 = vmatprep.subr.bf16.mxu0 0
      %772 = vmatpush1.bf16.msra.mxu0 0
      %773 = vmatprep.subr.bf16.mxu0 0
      %774 = vmatpush1.bf16.msra.mxu0 0
      %775 = vmatprep.subr.bf16.mxu0 0
      %776 = vmatpush1.bf16.msra.mxu0 0
      %777 = vmatprep.subr.bf16.mxu0 0
      %778 = vmatpush1.bf16.msra.mxu0 0
      %779 = vmatprep.subr.bf16.mxu0 0
      %780 = vmatpush1.bf16.msra.mxu0 0
      %781 = vmatprep.subr.bf16.mxu0 0
      %782 = vmatpush1.bf16.msra.mxu0 0
      %783 = vmatprep.subr.bf16.mxu0 0
      %784 = vmatpush1.bf16.msra.mxu0 0
      %785 = vmatprep.subr.bf16.mxu0 0
      %786 = vmatpush1.bf16.msra.mxu0 0
      %787 = vmatprep.mubr.bf16.mxu0 0
      %788 = vmatmul.mubr.bf16.gmra.mrb[0].mxu0 %v746
      %v789 = vpop.f32.mrb[0].mxu0
      %v790 = vadd.f32 0.0, %v789
      %v791 = vpop.f32.mrb[0].mxu0
      %v792 = vadd.f32 0.0, %v791
      %v793 = vpop.f32.mrb[0].mxu0
      %v794 = vpop.f32.mrb[0].mxu0
      %795 = vdwg.mxu0
      %v796 = vld [vmem:[%s9] sm:$0xf]
      %v797 = vld [vmem:[%s10] sm:$0xf]
      %v798 = vsel %vm748, %v790, 0.0
      %v799 = vsel %vm748, %v792, 0.0
      %v800 = vadd.f32 %v798, %v799
      %801 = vadd.xlane.f32.xlu0 %v800
      %v802 = vpop.xlane.xlu0 %801
      %v803 = vrot.slane %v802, 4
      %v804 = vadd.f32 %v802, %v803
      %v805 = vrot.slane %v804, 2
      %v806 = vadd.f32 %v804, %v805
      %v807 = vrot.slane %v806, 1
      %v808 = vadd.f32 %v806, %v807
      %s809 = vtos %v808
      %v810 = vmul.f32 %v790, %v790
      %v811 = vmul.f32 %v792, %v792
      %v812 = vsel %vm748, %v810, 0.0
      %v813 = vsel %vm748, %v811, 0.0
      %v814 = vadd.f32 %v812, %v813
      %815 = vadd.xlane.f32.xlu0 %v814
      %v816 = vpop.xlane.xlu0 %815
      %v817 = vrot.slane %v816, 4
      %v818 = vadd.f32 %v816, %v817
      %v819 = vrot.slane %v818, 2
      %v820 = vadd.f32 %v818, %v819
      %v821 = vrot.slane %v820, 1
      %v822 = vadd.f32 %v820, %v821
      %s823 = vtos %v822
      %s824 = smul.f32 %s809, 0.0009765625
      %s825 = smul.f32 %s823, 0.0009765625
      %s826 = smul.f32 %s824, %s824
      %s827 = ssub.f32 %s825, %s826
      %s828 = smax.f32 %s827, 0.0
      %s829 = sadd.f32 %s828, 1e-05
      %v830 = vstv %s829
      %v831 = vrsqrt.pop %v830
      %s832 = vtos %v831
      %v833 = vstv %s832
      %v834 = vmul.f32 %v796, %v833
      %v835 = vstv %s824
      %v836 = vmul.f32 %v835, %v834
      %v837 = vsub.f32 %v797, %v836
      %839 = vset.pattern.permute.xlu0 0
      %840 = vperm.xlu0 %839, %v834
      %v841 = vpop.permute.xlu0 %840
      %v843 = vmul.f32 %v790, %v841
      %v844 = vmul.f32 %v792, %v841
      %846 = vset.pattern.permute.xlu0 0
      %847 = vperm.xlu0 %846, %v837
      %v848 = vpop.permute.xlu0 %847
      %v850 = vadd.f32 %v843, %v848
      %v851 = vadd.f32 %v844, %v848
      %v852 = vadd.f32 %v850, %v388
      %v853 = vadd.f32 %v851, %v426
      %v856 = vcombine.low %v852, %v853
      %858 = vst [vmem:[%s386] sm:$0xff] %v856
      %p859 = scmp.lt.s32.totalorder %s22, 1
      %s860 = scalar_select %p859, %s22, 1
      %s861 = smul.addr %s860, 2
      %s862 = smul.addr %s861, 4
      %s863 = scalar_lea.vmem %s11, %s862
      // Predicated region
      $region65: #{inverted_res_block.1} parent=63 // pred_check
        %p864 = pneg %p276
      $region66: #{inverted_res_block.1} parent=63 // pred_check_branch
        %866 = sbr.rel (%p864) target = $region68
      $region67: #{inverted_res_block.1} parent=63 // pred_region
        _
      $region68: #{inverted_res_block.1} parent=63 // pred_fallthru
        _
    $region64: #{inverted_res_block.1} parent=5 // pred_fallthru
      _
    %p867 = scmp.le.s32.totalorder 2, %s17
    // Predicated region
    $region69: #{inverted_res_block.1} parent=5 // pred_check
      %p868 = pneg %p867
    $region70: #{inverted_res_block.1} parent=5 // pred_check_branch
      %870 = sbr.rel (%p868) target = $region72
    $region71: #{inverted_res_block.1} parent=5 // pred_region
      %s871 = ssub.s32 %s17, 2
      // Predicated region
      $region73: #{inverted_res_block.1} parent=71 // pred_check
        %p872 = pneg %p282
      $region74: #{inverted_res_block.1} parent=71 // pred_check_branch
        %874 = sbr.rel (%p872) target = $region76
      $region75: #{inverted_res_block.1} parent=71 // pred_region
        %p875 = scmp.lt.s32.totalorder %s23, 1
        %s876 = scalar_select %p875, %s23, 1
        %s877 = smul.addr %s876, 2
        %s878 = smul.addr %s877, 4
        %s879 = scalar_lea.vmem %s11, %s878
      $region76: #{inverted_res_block.1} parent=71 // pred_fallthru
        _
    $region72: #{inverted_res_block.1} parent=5 // pred_fallthru
      _
  $region6: #{inverted_res_block.1} parent=0 // loop_footer
    %s21 = sadd.s32 1, %s17
  $region7: #{inverted_res_block.1} parent=0 // loop_footer_branch
    %16 = sbr.rel target = $region3
  $region8: #{inverted_res_block.1} parent=0 // loop_exit
    _

</llo_original>
